<compile_context>
chip_gen: v7x
topology: tpu7x:2x2x1
jax: 0.10.0
libtpu: 0.0.40
codegen_flags: <defaults>
</compile_context>

<pallas_src>
import functools

import jax
import jax.numpy as jnp
from jax import lax
from jax.experimental import pallas as pl
from jax.experimental.pallas import tpu as pltpu


def _round_up(x, m):
    return (x + m - 1) // m * m


def basic_block_kernel(x_ref, w1_ref, w2_ref, b1_ref, b2_ref, mask_ref,
                       out_ref, xs_ref, mid_ref, tap_ref, *, width, hw, front):
    """Fused BasicBlock forward for one image (one grid step).

    Flat layout: channels (padded to Cp) on sublanes, the *unpadded* image
    flattened onto lanes, q = h*W + w.  conv padding=1 is realized by the
    zero frames of xs_ref/mid_ref plus per-tap validity masks.

      x_ref:    (1, Cp, HW)     flat f32 input image (residual source)
      w1_ref:   (Cp, 9*Cp)      conv1 weights * bn1 scale, tap-major columns
      w2_ref:   (Cp, 9*Cp)      conv2 weights * bn2 scale
      b1/b2:    (Cp, 1)         folded BN biases (f32)
      mask_ref: (9, Qp)         1.0 where tap k's source pixel is in-image
      out_ref:  (1, Cp, HW)     flat output (== final NCHW tensor)
      xs_ref:   (Cp, L)         zero-framed staged input (compute dtype)
      mid_ref:  (Cp, L)         zero-framed staged intermediate
      tap_ref:  (9*Cp, Qp)      im2col operand, tap k at rows [k*Cp,(k+1)*Cp)
    """
    Cp, L = xs_ref.shape
    Qp = tap_ref.shape[-1]
    cdt = xs_ref.dtype

    # ---- stage the input into a zero-framed scratch (in-kernel padding) ---
    # Frames are rewritten every grid step so the kernel stays correct when
    # the batch axis is sharded across TensorCores.
    xs_ref[:, 0:front] = jnp.zeros((Cp, front), cdt)
    xs_ref[:, front + hw:L] = jnp.zeros((Cp, L - front - hw), cdt)
    xs_ref[:, front:front + hw] = x_ref[0].astype(cdt)

    mask = mask_ref[...]                                  # (9, Qp), {0,1}

    # ---- im2col staging for conv1 (shift work decoupled from the MXU) ----
    for k in range(9):
        kh, kw = divmod(k, 3)
        off = front + (kh - 1) * width + (kw - 1)         # always >= 0
        tap_ref[k * Cp:(k + 1) * Cp, :] = (
            xs_ref[:, off:off + Qp] * mask[k:k + 1, :])

    # ---- conv1 as ONE K = 9*Cp MXU matmul (bn1 scale folded in weights) ---
    acc1 = jnp.dot(w1_ref[...], tap_ref[...],
                   preferred_element_type=jnp.float32)
    out1 = jnp.maximum(acc1 + b1_ref[...], 0.0)           # bn1 bias + relu

    # ---- stage the intermediate into its own zero-framed scratch ----------
    mid_ref[:, 0:front] = jnp.zeros((Cp, front), cdt)
    mid_ref[:, front + Qp:L] = jnp.zeros((Cp, L - front - Qp), cdt)
    mid_ref[:, front:front + Qp] = out1.astype(cdt)

    # ---- im2col staging for conv2 (reuses tap_ref) -------------------------
    for k in range(9):
        kh, kw = divmod(k, 3)
        off = front + (kh - 1) * width + (kw - 1)
        tap_ref[k * Cp:(k + 1) * Cp, :] = (
            mid_ref[:, off:off + Qp] * mask[k:k + 1, :])

    # ---- conv2 + bn2 bias + f32 identity residual + relu ------------------
    acc2 = jnp.dot(w2_ref[...], tap_ref[...],
                   preferred_element_type=jnp.float32)
    out2 = acc2[:, 0:hw] + b2_ref[...] + x_ref[0]         # residual in f32
    out_ref[0] = jnp.maximum(out2, 0.0).astype(out_ref.dtype)


def basic_block_forward(x_nchw, w1, w2, bn1, bn2, eps=1e-5,
                        compute_dtype=jnp.bfloat16, out_dtype=None):
    """BasicBlock forward.

    x_nchw: (N, C, H, W) float32
    w1, w2: (C, C, 3, 3) float32 (PyTorch conv weight layout)
    bn1, bn2: dicts with 'gamma', 'beta', 'mean', 'var' of shape (C,)
    Returns (N, C, H, W) in `out_dtype` (defaults to compute_dtype).
    """
    N, C, H, W = x_nchw.shape
    assert w1.shape == (C, C, 3, 3) and w2.shape == (C, C, 3, 3), \
        "identity residual requires inplanes == planes"
    if out_dtype is None:
        out_dtype = compute_dtype

    HW = H * W
    Qp = _round_up(HW, 128)                 # lane-padded staged-operand width
    FRONT = _round_up(W + 1, 128)           # >= max |tap offset|, 128-aligned
    L = 2 * FRONT + Qp                      # framed scratch length
    sub = 16 if jnp.dtype(compute_dtype).itemsize == 2 else 8
    Cp = _round_up(C, sub)                  # sublane-packing aligned channels

    # Input stays in its natural flat NCHW layout (pure reshape, no padded
    # HBM copy); the channel pad is a no-op for real ResNet channel counts.
    x_flat = x_nchw.reshape(N, C, HW)
    if Cp > C:
        x_flat = jnp.pad(x_flat, ((0, 0), (0, Cp - C), (0, 0)))

    def fold(w, bn):
        scale = bn["gamma"] / jnp.sqrt(bn["var"] + eps)
        bias = bn["beta"] - bn["mean"] * scale
        wt = jnp.transpose(w * scale[:, None, None, None], (0, 2, 3, 1))
        wt = jnp.pad(wt, ((0, Cp - C), (0, 0), (0, 0), (0, Cp - C)))
        wf = wt.reshape(Cp, 9 * Cp).astype(compute_dtype)   # (o, k*Cp + c)
        bf = jnp.pad(bias, (0, Cp - C)).reshape(Cp, 1).astype(jnp.float32)
        return wf, bf

    w1f, b1 = fold(w1, bn1)
    w2f, b2 = fold(w2, bn2)

    # Per-tap validity over output positions q = h*W + w: realizes conv
    # padding=1 (and kills lane-pad junk) without a padded image layout.
    q = jnp.arange(Qp)
    h = q // W
    w = q % W
    rows = []
    for k in range(9):
        kh, kw = divmod(k, 3)
        hh = h + (kh - 1)
        ww = w + (kw - 1)
        rows.append((hh >= 0) & (hh < H) & (ww >= 0) & (ww < W))
    mask = jnp.stack(rows).astype(compute_dtype)             # (9, Qp)

    full2 = lambda shape: pl.BlockSpec(shape, lambda n: (0, 0))
    kernel = functools.partial(basic_block_kernel, width=W, hw=HW, front=FRONT)

    out = pl.pallas_call(
        kernel,
        out_shape=jax.ShapeDtypeStruct((N, Cp, HW), out_dtype),
        grid_spec=pltpu.PrefetchScalarGridSpec(
            num_scalar_prefetch=0,
            grid=(N,),
            in_specs=[
                pl.BlockSpec((1, Cp, HW), lambda n: (n, 0, 0)),
                full2((Cp, 9 * Cp)),
                full2((Cp, 9 * Cp)),
                full2((Cp, 1)),
                full2((Cp, 1)),
                full2((9, Qp)),
            ],
            out_specs=pl.BlockSpec((1, Cp, HW), lambda n: (n, 0, 0)),
            scratch_shapes=[
                pltpu.VMEM((Cp, L), compute_dtype),          # xs  (framed in)
                pltpu.VMEM((Cp, L), compute_dtype),          # mid (framed mid)
                pltpu.VMEM((9 * Cp, Qp), compute_dtype),     # im2col operand
            ]),
        compiler_params=pltpu.CompilerParams(
            dimension_semantics=("parallel",)),
    )(x_flat, w1f, w2f, b1, b2, mask)

    return out[:, :C, :].reshape(N, C, H, W)


def _reference_forward(x, w1, w2, bn1, bn2, eps=1e-5,
                       compute_dtype=jnp.float32):
    """Pure-JAX (XLA) reference of the same math, NCHW.

    Mirrors the kernel's quantization points: BN scale folded into weights,
    conv operands in compute_dtype, f32 accumulation, f32 bias/residual math.
    """
    def fold(w, bn):
        scale = bn["gamma"] / jnp.sqrt(bn["var"] + eps)
        bias = bn["beta"] - bn["mean"] * scale
        return w * scale[:, None, None, None], bias.reshape(1, -1, 1, 1)

    def conv(a, w):
        return lax.conv_general_dilated(
            a.astype(compute_dtype), w.astype(compute_dtype),
            window_strides=(1, 1), padding=((1, 1), (1, 1)),
            dimension_numbers=("NCHW", "OIHW", "NCHW"),
            preferred_element_type=jnp.float32)

    w1f, b1 = fold(w1, bn1)
    w2f, b2 = fold(w2, bn2)
    out = jnp.maximum(conv(x, w1f) + b1, 0.0)
    out = conv(out, w2f) + b2 + x.astype(jnp.float32)
    return jnp.maximum(out, 0.0)


if __name__ == "__main__":
    # Small shapes: batch=2, inplanes=planes=4, spatial=16x16.
    N, C, H, W = 2, 4, 16, 16

    key = jax.random.PRNGKey(0)
    kx, kw1, kw2, kg1, kb1, km1, kv1, kg2, kb2, km2, kv2 = jax.random.split(key, 11)

    x = jax.random.normal(kx, (N, C, H, W), dtype=jnp.float32)
    w1 = jax.random.normal(kw1, (C, C, 3, 3), dtype=jnp.float32) * 0.1
    w2 = jax.random.normal(kw2, (C, C, 3, 3), dtype=jnp.float32) * 0.1
    bn1 = dict(gamma=jax.random.normal(kg1, (C,)) * 0.1 + 1.0,
               beta=jax.random.normal(kb1, (C,)) * 0.1,
               mean=jax.random.normal(km1, (C,)) * 0.1,
               var=jax.random.uniform(kv1, (C,)) * 0.5 + 0.5)
    bn2 = dict(gamma=jax.random.normal(kg2, (C,)) * 0.1 + 1.0,
               beta=jax.random.normal(kb2, (C,)) * 0.1,
               mean=jax.random.normal(km2, (C,)) * 0.1,
               var=jax.random.uniform(kv2, (C,)) * 0.5 + 0.5)

    # bf16 fast path (bf16 output), plus an f32 path for tight validation.
    out_bf16 = jax.block_until_ready(basic_block_forward(x, w1, w2, bn1, bn2))
    out_f32 = jax.block_until_ready(
        basic_block_forward(x, w1, w2, bn1, bn2, compute_dtype=jnp.float32))

    ref_f32 = jax.block_until_ready(_reference_forward(x, w1, w2, bn1, bn2))
    ref_bf16 = jax.block_until_ready(
        _reference_forward(x, w1, w2, bn1, bn2, compute_dtype=jnp.bfloat16))

    assert out_f32.shape == (N, C, H, W) and out_bf16.shape == (N, C, H, W)
    assert out_bf16.dtype == jnp.bfloat16 and out_f32.dtype == jnp.float32

    err_f32 = float(jnp.max(jnp.abs(out_f32 - ref_f32)))
    err_bf16 = float(jnp.max(jnp.abs(out_bf16.astype(jnp.float32) - ref_bf16)))
    assert err_f32 < 2e-3, f"f32 mismatch vs XLA: {err_f32}"
    assert err_bf16 < 5e-2, f"bf16 mismatch vs XLA: {err_bf16}"

    print("KERNEL_OK")
</pallas_src>

<mosaic_0001>
module attributes {stable_mosaic.version = 11 : i64} {
  func.func @basic_block_kernel(%arg0: i32, %arg1: memref<1x16x256xf32, #tpu.memory_space<vmem>>, %arg2: memref<16x144xbf16, #tpu.memory_space<vmem>>, %arg3: memref<16x144xbf16, #tpu.memory_space<vmem>>, %arg4: memref<16x1xf32, #tpu.memory_space<vmem>>, %arg5: memref<16x1xf32, #tpu.memory_space<vmem>>, %arg6: memref<9x256xbf16, #tpu.memory_space<vmem>>, %arg7: memref<1x16x256xbf16, #tpu.memory_space<vmem>>, %arg8: memref<16x512xbf16, #tpu.memory_space<vmem>>, %arg9: memref<16x512xbf16, #tpu.memory_space<vmem>>, %arg10: memref<144x256xbf16, #tpu.memory_space<vmem>>) attributes {dimension_semantics = [#tpu.dimension_semantics<parallel>], iteration_bounds = array<i64: 2>, scalar_prefetch = 0 : i64, scratch_operands = 3 : i64, tpu.core_type = #tpu.core_type<tc>, window_params = [{transform_indices = @transform_0, window_bounds = array<i64: 1, 16, 256>}, {pipeline_mode = #tpu.pipeline_mode<synchronous>, transform_indices = @transform_1, window_bounds = array<i64: 16, 144>}, {pipeline_mode = #tpu.pipeline_mode<synchronous>, transform_indices = @transform_2, window_bounds = array<i64: 16, 144>}, {pipeline_mode = #tpu.pipeline_mode<synchronous>, transform_indices = @transform_3, window_bounds = array<i64: 16, 1>}, {pipeline_mode = #tpu.pipeline_mode<synchronous>, transform_indices = @transform_4, window_bounds = array<i64: 16, 1>}, {pipeline_mode = #tpu.pipeline_mode<synchronous>, transform_indices = @transform_5, window_bounds = array<i64: 9, 256>}, {transform_indices = @transform_6, window_bounds = array<i64: 1, 16, 256>}]} {
    %cst = arith.constant 0.000000e+00 : bf16
    %0 = vector.broadcast %cst : bf16 to vector<16x128xbf16>
    %c0 = arith.constant 0 : index
    %c0_0 = arith.constant 0 : index
    %1 = vector.load %arg8[%c0, %c0_0] : memref<16x512xbf16, #tpu.memory_space<vmem>>, vector<16x128xbf16>
    tpu.vector_store %arg8[%c0, %c0_0], %0 {strides = array<i32>} : memref<16x512xbf16, #tpu.memory_space<vmem>>, vector<16x128xbf16>,
    %cst_1 = arith.constant 0.000000e+00 : bf16
    %2 = vector.broadcast %cst_1 : bf16 to vector<16x128xbf16>
    %c0_2 = arith.constant 0 : index
    %c384 = arith.constant 384 : index
    %3 = vector.load %arg8[%c0_2, %c384] : memref<16x512xbf16, #tpu.memory_space<vmem>>, vector<16x128xbf16>
    tpu.vector_store %arg8[%c0_2, %c384], %2 {strides = array<i32>} : memref<16x512xbf16, #tpu.memory_space<vmem>>, vector<16x128xbf16>,
    %c0_3 = arith.constant 0 : index
    %c0_4 = arith.constant 0 : index
    %c0_5 = arith.constant 0 : index
    %4 = vector.load %arg1[%c0_3, %c0_4, %c0_5] : memref<1x16x256xf32, #tpu.memory_space<vmem>>, vector<1x16x256xf32>
    %5 = vector.shape_cast %4 : vector<1x16x256xf32> to vector<16x256xf32>
    %6 = arith.truncf %5 : vector<16x256xf32> to vector<16x256xbf16>
    %c0_6 = arith.constant 0 : index
    %c128 = arith.constant 128 : index
    %7 = vector.load %arg8[%c0_6, %c128] : memref<16x512xbf16, #tpu.memory_space<vmem>>, vector<16x256xbf16>
    tpu.vector_store %arg8[%c0_6, %c128], %6 {strides = array<i32>} : memref<16x512xbf16, #tpu.memory_space<vmem>>, vector<16x256xbf16>,
    %c0_7 = arith.constant 0 : index
    %c0_8 = arith.constant 0 : index
    %8 = vector.load %arg6[%c0_7, %c0_8] : memref<9x256xbf16, #tpu.memory_space<vmem>>, vector<9x256xbf16>
    %c0_9 = arith.constant 0 : index
    %c111 = arith.constant 111 : index
    %9 = vector.load %arg8[%c0_9, %c111] : memref<16x512xbf16, #tpu.memory_space<vmem>>, vector<16x256xbf16>
    %10 = vector.extract_strided_slice %8 {offsets = [0, 0], sizes = [1, 256], strides = [1, 1]} : vector<9x256xbf16> to vector<1x256xbf16>
    %11 = vector.broadcast %10 : vector<1x256xbf16> to vector<16x256xbf16>
    %12 = arith.mulf %9, %11 : vector<16x256xbf16>
    %c0_10 = arith.constant 0 : index
    %c0_11 = arith.constant 0 : index
    %13 = vector.load %arg10[%c0_10, %c0_11] : memref<144x256xbf16, #tpu.memory_space<vmem>>, vector<16x256xbf16>
    tpu.vector_store %arg10[%c0_10, %c0_11], %12 {strides = array<i32>} : memref<144x256xbf16, #tpu.memory_space<vmem>>, vector<16x256xbf16>,
    %c0_12 = arith.constant 0 : index
    %c112 = arith.constant 112 : index
    %14 = vector.load %arg8[%c0_12, %c112] : memref<16x512xbf16, #tpu.memory_space<vmem>>, vector<16x256xbf16>
    %15 = vector.extract_strided_slice %8 {offsets = [1, 0], sizes = [1, 256], strides = [1, 1]} : vector<9x256xbf16> to vector<1x256xbf16>
    %16 = vector.broadcast %15 : vector<1x256xbf16> to vector<16x256xbf16>
    %17 = arith.mulf %14, %16 : vector<16x256xbf16>
    %c16 = arith.constant 16 : index
    %c0_13 = arith.constant 0 : index
    %18 = vector.load %arg10[%c16, %c0_13] : memref<144x256xbf16, #tpu.memory_space<vmem>>, vector<16x256xbf16>
    tpu.vector_store %arg10[%c16, %c0_13], %17 {strides = array<i32>} : memref<144x256xbf16, #tpu.memory_space<vmem>>, vector<16x256xbf16>,
    %c0_14 = arith.constant 0 : index
    %c113 = arith.constant 113 : index
    %19 = vector.load %arg8[%c0_14, %c113] : memref<16x512xbf16, #tpu.memory_space<vmem>>, vector<16x256xbf16>
    %20 = vector.extract_strided_slice %8 {offsets = [2, 0], sizes = [1, 256], strides = [1, 1]} : vector<9x256xbf16> to vector<1x256xbf16>
    %21 = vector.broadcast %20 : vector<1x256xbf16> to vector<16x256xbf16>
    %22 = arith.mulf %19, %21 : vector<16x256xbf16>
    %c32 = arith.constant 32 : index
    %c0_15 = arith.constant 0 : index
    %23 = vector.load %arg10[%c32, %c0_15] : memref<144x256xbf16, #tpu.memory_space<vmem>>, vector<16x256xbf16>
    tpu.vector_store %arg10[%c32, %c0_15], %22 {strides = array<i32>} : memref<144x256xbf16, #tpu.memory_space<vmem>>, vector<16x256xbf16>,
    %c0_16 = arith.constant 0 : index
    %c127 = arith.constant 127 : index
    %24 = vector.load %arg8[%c0_16, %c127] : memref<16x512xbf16, #tpu.memory_space<vmem>>, vector<16x256xbf16>
    %25 = vector.extract_strided_slice %8 {offsets = [3, 0], sizes = [1, 256], strides = [1, 1]} : vector<9x256xbf16> to vector<1x256xbf16>
    %26 = vector.broadcast %25 : vector<1x256xbf16> to vector<16x256xbf16>
    %27 = arith.mulf %24, %26 : vector<16x256xbf16>
    %c48 = arith.constant 48 : index
    %c0_17 = arith.constant 0 : index
    %28 = vector.load %arg10[%c48, %c0_17] : memref<144x256xbf16, #tpu.memory_space<vmem>>, vector<16x256xbf16>
    tpu.vector_store %arg10[%c48, %c0_17], %27 {strides = array<i32>} : memref<144x256xbf16, #tpu.memory_space<vmem>>, vector<16x256xbf16>,
    %c0_18 = arith.constant 0 : index
    %c128_19 = arith.constant 128 : index
    %29 = vector.load %arg8[%c0_18, %c128_19] : memref<16x512xbf16, #tpu.memory_space<vmem>>, vector<16x256xbf16>
    %30 = vector.extract_strided_slice %8 {offsets = [4, 0], sizes = [1, 256], strides = [1, 1]} : vector<9x256xbf16> to vector<1x256xbf16>
    %31 = vector.broadcast %30 : vector<1x256xbf16> to vector<16x256xbf16>
    %32 = arith.mulf %29, %31 : vector<16x256xbf16>
    %c64 = arith.constant 64 : index
    %c0_20 = arith.constant 0 : index
    %33 = vector.load %arg10[%c64, %c0_20] : memref<144x256xbf16, #tpu.memory_space<vmem>>, vector<16x256xbf16>
    tpu.vector_store %arg10[%c64, %c0_20], %32 {strides = array<i32>} : memref<144x256xbf16, #tpu.memory_space<vmem>>, vector<16x256xbf16>,
    %c0_21 = arith.constant 0 : index
    %c129 = arith.constant 129 : index
    %34 = vector.load %arg8[%c0_21, %c129] : memref<16x512xbf16, #tpu.memory_space<vmem>>, vector<16x256xbf16>
    %35 = vector.extract_strided_slice %8 {offsets = [5, 0], sizes = [1, 256], strides = [1, 1]} : vector<9x256xbf16> to vector<1x256xbf16>
    %36 = vector.broadcast %35 : vector<1x256xbf16> to vector<16x256xbf16>
    %37 = arith.mulf %34, %36 : vector<16x256xbf16>
    %c80 = arith.constant 80 : index
    %c0_22 = arith.constant 0 : index
    %38 = vector.load %arg10[%c80, %c0_22] : memref<144x256xbf16, #tpu.memory_space<vmem>>, vector<16x256xbf16>
    tpu.vector_store %arg10[%c80, %c0_22], %37 {strides = array<i32>} : memref<144x256xbf16, #tpu.memory_space<vmem>>, vector<16x256xbf16>,
    %c0_23 = arith.constant 0 : index
    %c143 = arith.constant 143 : index
    %39 = vector.load %arg8[%c0_23, %c143] : memref<16x512xbf16, #tpu.memory_space<vmem>>, vector<16x256xbf16>
    %40 = vector.extract_strided_slice %8 {offsets = [6, 0], sizes = [1, 256], strides = [1, 1]} : vector<9x256xbf16> to vector<1x256xbf16>
    %41 = vector.broadcast %40 : vector<1x256xbf16> to vector<16x256xbf16>
    %42 = arith.mulf %39, %41 : vector<16x256xbf16>
    %c96 = arith.constant 96 : index
    %c0_24 = arith.constant 0 : index
    %43 = vector.load %arg10[%c96, %c0_24] : memref<144x256xbf16, #tpu.memory_space<vmem>>, vector<16x256xbf16>
    tpu.vector_store %arg10[%c96, %c0_24], %42 {strides = array<i32>} : memref<144x256xbf16, #tpu.memory_space<vmem>>, vector<16x256xbf16>,
    %c0_25 = arith.constant 0 : index
    %c144 = arith.constant 144 : index
    %44 = vector.load %arg8[%c0_25, %c144] : memref<16x512xbf16, #tpu.memory_space<vmem>>, vector<16x256xbf16>
    %45 = vector.extract_strided_slice %8 {offsets = [7, 0], sizes = [1, 256], strides = [1, 1]} : vector<9x256xbf16> to vector<1x256xbf16>
    %46 = vector.broadcast %45 : vector<1x256xbf16> to vector<16x256xbf16>
    %47 = arith.mulf %44, %46 : vector<16x256xbf16>
    %c112_26 = arith.constant 112 : index
    %c0_27 = arith.constant 0 : index
    %48 = vector.load %arg10[%c112_26, %c0_27] : memref<144x256xbf16, #tpu.memory_space<vmem>>, vector<16x256xbf16>
    tpu.vector_store %arg10[%c112_26, %c0_27], %47 {strides = array<i32>} : memref<144x256xbf16, #tpu.memory_space<vmem>>, vector<16x256xbf16>,
    %c0_28 = arith.constant 0 : index
    %c145 = arith.constant 145 : index
    %49 = vector.load %arg8[%c0_28, %c145] : memref<16x512xbf16, #tpu.memory_space<vmem>>, vector<16x256xbf16>
    %50 = vector.extract_strided_slice %8 {offsets = [8, 0], sizes = [1, 256], strides = [1, 1]} : vector<9x256xbf16> to vector<1x256xbf16>
    %51 = vector.broadcast %50 : vector<1x256xbf16> to vector<16x256xbf16>
    %52 = arith.mulf %49, %51 : vector<16x256xbf16>
    %c128_29 = arith.constant 128 : index
    %c0_30 = arith.constant 0 : index
    %53 = vector.load %arg10[%c128_29, %c0_30] : memref<144x256xbf16, #tpu.memory_space<vmem>>, vector<16x256xbf16>
    tpu.vector_store %arg10[%c128_29, %c0_30], %52 {strides = array<i32>} : memref<144x256xbf16, #tpu.memory_space<vmem>>, vector<16x256xbf16>,
    %c0_31 = arith.constant 0 : index
    %c0_32 = arith.constant 0 : index
    %54 = vector.load %arg2[%c0_31, %c0_32] : memref<16x144xbf16, #tpu.memory_space<vmem>>, vector<16x144xbf16>
    %c0_33 = arith.constant 0 : index
    %c0_34 = arith.constant 0 : index
    %55 = vector.load %arg10[%c0_33, %c0_34] : memref<144x256xbf16, #tpu.memory_space<vmem>>, vector<144x256xbf16>
    %cst_35 = arith.constant dense<0.000000e+00> : vector<16x256xf32>
    %56 = tpu.matmul %54, %55, %cst_35 {dimension_numbers = #tpu.dot_dimension_numbers<[1], [0], [0], [1], [0, 0, 1, 1], [], []>} : vector<16x144xbf16>, vector<144x256xbf16>, vector<16x256xf32> -> vector<16x256xf32>
    %c0_36 = arith.constant 0 : index
    %c0_37 = arith.constant 0 : index
    %57 = vector.load %arg4[%c0_36, %c0_37] : memref<16x1xf32, #tpu.memory_space<vmem>>, vector<16x1xf32>
    %58 = vector.broadcast %57 : vector<16x1xf32> to vector<16x256xf32>
    %59 = arith.addf %56, %58 : vector<16x256xf32>
    %cst_38 = arith.constant 0.000000e+00 : f32
    %60 = vector.broadcast %cst_38 : f32 to vector<16x256xf32>
    %61 = arith.maximumf %59, %60 : vector<16x256xf32>
    %cst_39 = arith.constant 0.000000e+00 : bf16
    %62 = vector.broadcast %cst_39 : bf16 to vector<16x128xbf16>
    %c0_40 = arith.constant 0 : index
    %c0_41 = arith.constant 0 : index
    %63 = vector.load %arg9[%c0_40, %c0_41] : memref<16x512xbf16, #tpu.memory_space<vmem>>, vector<16x128xbf16>
    tpu.vector_store %arg9[%c0_40, %c0_41], %62 {strides = array<i32>} : memref<16x512xbf16, #tpu.memory_space<vmem>>, vector<16x128xbf16>,
    %cst_42 = arith.constant 0.000000e+00 : bf16
    %64 = vector.broadcast %cst_42 : bf16 to vector<16x128xbf16>
    %c0_43 = arith.constant 0 : index
    %c384_44 = arith.constant 384 : index
    %65 = vector.load %arg9[%c0_43, %c384_44] : memref<16x512xbf16, #tpu.memory_space<vmem>>, vector<16x128xbf16>
    tpu.vector_store %arg9[%c0_43, %c384_44], %64 {strides = array<i32>} : memref<16x512xbf16, #tpu.memory_space<vmem>>, vector<16x128xbf16>,
    %66 = arith.truncf %61 : vector<16x256xf32> to vector<16x256xbf16>
    %c0_45 = arith.constant 0 : index
    %c128_46 = arith.constant 128 : index
    %67 = vector.load %arg9[%c0_45, %c128_46] : memref<16x512xbf16, #tpu.memory_space<vmem>>, vector<16x256xbf16>
    tpu.vector_store %arg9[%c0_45, %c128_46], %66 {strides = array<i32>} : memref<16x512xbf16, #tpu.memory_space<vmem>>, vector<16x256xbf16>,
    %c0_47 = arith.constant 0 : index
    %c111_48 = arith.constant 111 : index
    %68 = vector.load %arg9[%c0_47, %c111_48] : memref<16x512xbf16, #tpu.memory_space<vmem>>, vector<16x256xbf16>
    %69 = vector.extract_strided_slice %8 {offsets = [0, 0], sizes = [1, 256], strides = [1, 1]} : vector<9x256xbf16> to vector<1x256xbf16>
    %70 = vector.broadcast %69 : vector<1x256xbf16> to vector<16x256xbf16>
    %71 = arith.mulf %68, %70 : vector<16x256xbf16>
    %c0_49 = arith.constant 0 : index
    %c0_50 = arith.constant 0 : index
    %72 = vector.load %arg10[%c0_49, %c0_50] : memref<144x256xbf16, #tpu.memory_space<vmem>>, vector<16x256xbf16>
    tpu.vector_store %arg10[%c0_49, %c0_50], %71 {strides = array<i32>} : memref<144x256xbf16, #tpu.memory_space<vmem>>, vector<16x256xbf16>,
    %c0_51 = arith.constant 0 : index
    %c112_52 = arith.constant 112 : index
    %73 = vector.load %arg9[%c0_51, %c112_52] : memref<16x512xbf16, #tpu.memory_space<vmem>>, vector<16x256xbf16>
    %74 = vector.extract_strided_slice %8 {offsets = [1, 0], sizes = [1, 256], strides = [1, 1]} : vector<9x256xbf16> to vector<1x256xbf16>
    %75 = vector.broadcast %74 : vector<1x256xbf16> to vector<16x256xbf16>
    %76 = arith.mulf %73, %75 : vector<16x256xbf16>
    %c16_53 = arith.constant 16 : index
    %c0_54 = arith.constant 0 : index
    %77 = vector.load %arg10[%c16_53, %c0_54] : memref<144x256xbf16, #tpu.memory_space<vmem>>, vector<16x256xbf16>
    tpu.vector_store %arg10[%c16_53, %c0_54], %76 {strides = array<i32>} : memref<144x256xbf16, #tpu.memory_space<vmem>>, vector<16x256xbf16>,
    %c0_55 = arith.constant 0 : index
    %c113_56 = arith.constant 113 : index
    %78 = vector.load %arg9[%c0_55, %c113_56] : memref<16x512xbf16, #tpu.memory_space<vmem>>, vector<16x256xbf16>
    %79 = vector.extract_strided_slice %8 {offsets = [2, 0], sizes = [1, 256], strides = [1, 1]} : vector<9x256xbf16> to vector<1x256xbf16>
    %80 = vector.broadcast %79 : vector<1x256xbf16> to vector<16x256xbf16>
    %81 = arith.mulf %78, %80 : vector<16x256xbf16>
    %c32_57 = arith.constant 32 : index
    %c0_58 = arith.constant 0 : index
    %82 = vector.load %arg10[%c32_57, %c0_58] : memref<144x256xbf16, #tpu.memory_space<vmem>>, vector<16x256xbf16>
    tpu.vector_store %arg10[%c32_57, %c0_58], %81 {strides = array<i32>} : memref<144x256xbf16, #tpu.memory_space<vmem>>, vector<16x256xbf16>,
    %c0_59 = arith.constant 0 : index
    %c127_60 = arith.constant 127 : index
    %83 = vector.load %arg9[%c0_59, %c127_60] : memref<16x512xbf16, #tpu.memory_space<vmem>>, vector<16x256xbf16>
    %84 = vector.extract_strided_slice %8 {offsets = [3, 0], sizes = [1, 256], strides = [1, 1]} : vector<9x256xbf16> to vector<1x256xbf16>
    %85 = vector.broadcast %84 : vector<1x256xbf16> to vector<16x256xbf16>
    %86 = arith.mulf %83, %85 : vector<16x256xbf16>
    %c48_61 = arith.constant 48 : index
    %c0_62 = arith.constant 0 : index
    %87 = vector.load %arg10[%c48_61, %c0_62] : memref<144x256xbf16, #tpu.memory_space<vmem>>, vector<16x256xbf16>
    tpu.vector_store %arg10[%c48_61, %c0_62], %86 {strides = array<i32>} : memref<144x256xbf16, #tpu.memory_space<vmem>>, vector<16x256xbf16>,
    %c0_63 = arith.constant 0 : index
    %c128_64 = arith.constant 128 : index
    %88 = vector.load %arg9[%c0_63, %c128_64] : memref<16x512xbf16, #tpu.memory_space<vmem>>, vector<16x256xbf16>
    %89 = vector.extract_strided_slice %8 {offsets = [4, 0], sizes = [1, 256], strides = [1, 1]} : vector<9x256xbf16> to vector<1x256xbf16>
    %90 = vector.broadcast %89 : vector<1x256xbf16> to vector<16x256xbf16>
    %91 = arith.mulf %88, %90 : vector<16x256xbf16>
    %c64_65 = arith.constant 64 : index
    %c0_66 = arith.constant 0 : index
    %92 = vector.load %arg10[%c64_65, %c0_66] : memref<144x256xbf16, #tpu.memory_space<vmem>>, vector<16x256xbf16>
    tpu.vector_store %arg10[%c64_65, %c0_66], %91 {strides = array<i32>} : memref<144x256xbf16, #tpu.memory_space<vmem>>, vector<16x256xbf16>,
    %c0_67 = arith.constant 0 : index
    %c129_68 = arith.constant 129 : index
    %93 = vector.load %arg9[%c0_67, %c129_68] : memref<16x512xbf16, #tpu.memory_space<vmem>>, vector<16x256xbf16>
    %94 = vector.extract_strided_slice %8 {offsets = [5, 0], sizes = [1, 256], strides = [1, 1]} : vector<9x256xbf16> to vector<1x256xbf16>
    %95 = vector.broadcast %94 : vector<1x256xbf16> to vector<16x256xbf16>
    %96 = arith.mulf %93, %95 : vector<16x256xbf16>
    %c80_69 = arith.constant 80 : index
    %c0_70 = arith.constant 0 : index
    %97 = vector.load %arg10[%c80_69, %c0_70] : memref<144x256xbf16, #tpu.memory_space<vmem>>, vector<16x256xbf16>
    tpu.vector_store %arg10[%c80_69, %c0_70], %96 {strides = array<i32>} : memref<144x256xbf16, #tpu.memory_space<vmem>>, vector<16x256xbf16>,
    %c0_71 = arith.constant 0 : index
    %c143_72 = arith.constant 143 : index
    %98 = vector.load %arg9[%c0_71, %c143_72] : memref<16x512xbf16, #tpu.memory_space<vmem>>, vector<16x256xbf16>
    %99 = vector.extract_strided_slice %8 {offsets = [6, 0], sizes = [1, 256], strides = [1, 1]} : vector<9x256xbf16> to vector<1x256xbf16>
    %100 = vector.broadcast %99 : vector<1x256xbf16> to vector<16x256xbf16>
    %101 = arith.mulf %98, %100 : vector<16x256xbf16>
    %c96_73 = arith.constant 96 : index
    %c0_74 = arith.constant 0 : index
    %102 = vector.load %arg10[%c96_73, %c0_74] : memref<144x256xbf16, #tpu.memory_space<vmem>>, vector<16x256xbf16>
    tpu.vector_store %arg10[%c96_73, %c0_74], %101 {strides = array<i32>} : memref<144x256xbf16, #tpu.memory_space<vmem>>, vector<16x256xbf16>,
    %c0_75 = arith.constant 0 : index
    %c144_76 = arith.constant 144 : index
    %103 = vector.load %arg9[%c0_75, %c144_76] : memref<16x512xbf16, #tpu.memory_space<vmem>>, vector<16x256xbf16>
    %104 = vector.extract_strided_slice %8 {offsets = [7, 0], sizes = [1, 256], strides = [1, 1]} : vector<9x256xbf16> to vector<1x256xbf16>
    %105 = vector.broadcast %104 : vector<1x256xbf16> to vector<16x256xbf16>
    %106 = arith.mulf %103, %105 : vector<16x256xbf16>
    %c112_77 = arith.constant 112 : index
    %c0_78 = arith.constant 0 : index
    %107 = vector.load %arg10[%c112_77, %c0_78] : memref<144x256xbf16, #tpu.memory_space<vmem>>, vector<16x256xbf16>
    tpu.vector_store %arg10[%c112_77, %c0_78], %106 {strides = array<i32>} : memref<144x256xbf16, #tpu.memory_space<vmem>>, vector<16x256xbf16>,
    %c0_79 = arith.constant 0 : index
    %c145_80 = arith.constant 145 : index
    %108 = vector.load %arg9[%c0_79, %c145_80] : memref<16x512xbf16, #tpu.memory_space<vmem>>, vector<16x256xbf16>
    %109 = vector.extract_strided_slice %8 {offsets = [8, 0], sizes = [1, 256], strides = [1, 1]} : vector<9x256xbf16> to vector<1x256xbf16>
    %110 = vector.broadcast %109 : vector<1x256xbf16> to vector<16x256xbf16>
    %111 = arith.mulf %108, %110 : vector<16x256xbf16>
    %c128_81 = arith.constant 128 : index
    %c0_82 = arith.constant 0 : index
    %112 = vector.load %arg10[%c128_81, %c0_82] : memref<144x256xbf16, #tpu.memory_space<vmem>>, vector<16x256xbf16>
    tpu.vector_store %arg10[%c128_81, %c0_82], %111 {strides = array<i32>} : memref<144x256xbf16, #tpu.memory_space<vmem>>, vector<16x256xbf16>,
    %c0_83 = arith.constant 0 : index
    %c0_84 = arith.constant 0 : index
    %113 = vector.load %arg3[%c0_83, %c0_84] : memref<16x144xbf16, #tpu.memory_space<vmem>>, vector<16x144xbf16>
    %c0_85 = arith.constant 0 : index
    %c0_86 = arith.constant 0 : index
    %114 = vector.load %arg10[%c0_85, %c0_86] : memref<144x256xbf16, #tpu.memory_space<vmem>>, vector<144x256xbf16>
    %cst_87 = arith.constant dense<0.000000e+00> : vector<16x256xf32>
    %115 = tpu.matmul %113, %114, %cst_87 {dimension_numbers = #tpu.dot_dimension_numbers<[1], [0], [0], [1], [0, 0, 1, 1], [], []>} : vector<16x144xbf16>, vector<144x256xbf16>, vector<16x256xf32> -> vector<16x256xf32>
    %c0_88 = arith.constant 0 : index
    %c0_89 = arith.constant 0 : index
    %116 = vector.load %arg5[%c0_88, %c0_89] : memref<16x1xf32, #tpu.memory_space<vmem>>, vector<16x1xf32>
    %117 = vector.broadcast %116 : vector<16x1xf32> to vector<16x256xf32>
    %118 = arith.addf %115, %117 : vector<16x256xf32>
    %c0_90 = arith.constant 0 : index
    %c0_91 = arith.constant 0 : index
    %c0_92 = arith.constant 0 : index
    %119 = vector.load %arg1[%c0_90, %c0_91, %c0_92] : memref<1x16x256xf32, #tpu.memory_space<vmem>>, vector<1x16x256xf32>
    %120 = vector.shape_cast %119 : vector<1x16x256xf32> to vector<16x256xf32>
    %121 = arith.addf %118, %120 : vector<16x256xf32>
    %cst_93 = arith.constant 0.000000e+00 : f32
    %122 = vector.broadcast %cst_93 : f32 to vector<16x256xf32>
    %123 = arith.maximumf %121, %122 : vector<16x256xf32>
    %124 = arith.truncf %123 : vector<16x256xf32> to vector<16x256xbf16>
    %c0_94 = arith.constant 0 : index
    %c0_95 = arith.constant 0 : index
    %c0_96 = arith.constant 0 : index
    %125 = vector.load %arg7[%c0_94, %c0_95, %c0_96] : memref<1x16x256xbf16, #tpu.memory_space<vmem>>, vector<1x16x256xbf16>
    %126 = vector.shape_cast %125 : vector<1x16x256xbf16> to vector<16x256xbf16>
    %127 = vector.shape_cast %124 : vector<16x256xbf16> to vector<1x16x256xbf16>
    tpu.vector_store %arg7[%c0_94, %c0_95, %c0_96], %127 {strides = array<i32>} : memref<1x16x256xbf16, #tpu.memory_space<vmem>>, vector<1x16x256xbf16>,
    return
  }
  func.func @transform_0(%arg0: i32) -> (i32, i32, i32) {
    %c0_i32 = arith.constant 0 : i32
    %c0_i32_0 = arith.constant 0 : i32
    %c0_i32_1 = arith.constant 0 : i32
    return %arg0, %c0_i32, %c0_i32_0 : i32, i32, i32
  }
  func.func @transform_1(%arg0: i32) -> (i32, i32) {
    %c0_i32 = arith.constant 0 : i32
    %c0_i32_0 = arith.constant 0 : i32
    %c0_i32_1 = arith.constant 0 : i32
    return %c0_i32, %c0_i32_0 : i32, i32
  }
  func.func @transform_2(%arg0: i32) -> (i32, i32) {
    %c0_i32 = arith.constant 0 : i32
    %c0_i32_0 = arith.constant 0 : i32
    %c0_i32_1 = arith.constant 0 : i32
    return %c0_i32, %c0_i32_0 : i32, i32
  }
  func.func @transform_3(%arg0: i32) -> (i32, i32) {
    %c0_i32 = arith.constant 0 : i32
    %c0_i32_0 = arith.constant 0 : i32
    %c0_i32_1 = arith.constant 0 : i32
    return %c0_i32, %c0_i32_0 : i32, i32
  }
  func.func @transform_4(%arg0: i32) -> (i32, i32) {
    %c0_i32 = arith.constant 0 : i32
    %c0_i32_0 = arith.constant 0 : i32
    %c0_i32_1 = arith.constant 0 : i32
    return %c0_i32, %c0_i32_0 : i32, i32
  }
  func.func @transform_5(%arg0: i32) -> (i32, i32) {
    %c0_i32 = arith.constant 0 : i32
    %c0_i32_0 = arith.constant 0 : i32
    %c0_i32_1 = arith.constant 0 : i32
    return %c0_i32, %c0_i32_0 : i32, i32
  }
  func.func @transform_6(%arg0: i32) -> (i32, i32, i32) {
    %c0_i32 = arith.constant 0 : i32
    %c0_i32_0 = arith.constant 0 : i32
    %c0_i32_1 = arith.constant 0 : i32
    return %arg0, %c0_i32, %c0_i32_0 : i32, i32, i32
  }
}

</mosaic_0001>

<llo_original>
// kernel: tpu_custom_call.1
$region0: #{tpu_custom_call.1}
  #allocation0 [shape = 'u32[]', space=smem, size = 0x4, offset = 0x4, fixed_abs, tag = 'smem constant byte address 0x4 - core index']
  #allocation1 [shape = 'u32[144,128]{1,0:T(1,128)}', space=vmem, size = 0x12000, scoped, tag = 'internal scratch']
  #allocation2 [shape = 'bf16[16,512]{1,0:T(16,128)(2,1)}', space=vmem, size = 0x4000, scoped, tag = 'scratch operand']
  #allocation3 [shape = 'bf16[16,512]{1,0:T(16,128)(2,1)}', space=vmem, size = 0x4000, scoped, tag = 'scratch operand']
  #allocation4 [shape = 'bf16[144,256]{1,0:T(16,128)(2,1)}', space=vmem, size = 0x12000, scoped, tag = 'scratch operand']
  %s0 = inlined_call_operand.hbm [shape: f32[2,16,256], index: 0, kind: input, shape index: {}]
  %s1 = inlined_call_operand.vmem [shape: bf16[16,144], index: 1, kind: input, shape index: {}]
  %s2 = inlined_call_operand.vmem [shape: bf16[16,144], index: 2, kind: input, shape index: {}]
  %s3 = inlined_call_operand.vmem [shape: f32[16,1], index: 3, kind: input, shape index: {}]
  %s4 = inlined_call_operand.vmem [shape: f32[16,1], index: 4, kind: input, shape index: {}]
  %s5 = inlined_call_operand.vmem [shape: bf16[9,256], index: 5, kind: input, shape index: {}]
  %s6 = inlined_call_operand.hbm [shape: bf16[2,16,256], index: 6, kind: output, shape index: {}]
  %s7 = sld [smem:[#allocation0]]
  $region61: #{tpu_custom_call.1} parent=0
    _
  %s9 = ssub.s32 1, %s7
  %s10 = scalar_select 0, %s9, %s7
  $region1: #{tpu_custom_call.1} parent=0
    #allocation5 [shape = 'u8[32768]{0}', space=vmem, size = 0x8000, scoped, tag = 'input window, operand 0']
    #allocation6 [shape = 's32[2]{0}', space=sflag, size = 0x8, scoped, tag = 'scoped memory for tpu_custom_call.1']
    #allocation7 [shape = 's32[2]{0}', space=sflag, size = 0x8, scoped, tag = 'scoped memory for tpu_custom_call.1']
    #allocation8 [shape = 'u8[16384]{0}', space=vmem, size = 0x4000, scoped, tag = 'output window, operand 0']
    %11 = vsyncpa [#allocation6], 0
    %s12 = scalar_lea.sflag [#allocation6], 1
    %13 = vsyncpa %s12, 0
    %14 = vsyncpa [#allocation7], 0
    %s15 = scalar_lea.sflag [#allocation7], 1
    %16 = vsyncpa %s15, 0
    loop: start=0, step=1, limit=4
    $region2: #{tpu_custom_call.1} parent=1 // loop_pre_header
      _
    $region3: #{tpu_custom_call.1} parent=1 // loop_header
      %s18 = sphi 0, %s22
      %p19 = scmp.ge.s32.totalorder %s18, 4
      %s28 = sphi 0, %s30
      %s31 = sphi 0, %s28
      %s32 = sphi 0, %s31
      %s48 = sphi 0, %s32
      %s52 = sphi 0, %s52
      %s54 = sphi 0, %s52
      %s55 = sphi 0, %s54
      %s69 = sphi 0, %s55
      %s73 = sphi 0, %s73
      %s75 = sphi 0, %s73
      %s76 = sphi 0, %s75
      %s90 = sphi 0, %s76
      %s94 = sphi 0, %s94
      %s96 = sphi 0, %s94
      %s97 = sphi 0, %s96
      %s111 = sphi 0, %s97
      %s115 = sphi 0, %s115
      %s117 = sphi 0, %s115
      %s118 = sphi 0, %s117
      %s132 = sphi 0, %s118
      %s136 = sphi 0, %s136
      %s138 = sphi 0, %s136
      %s139 = sphi 0, %s138
      %s153 = sphi 0, %s139
      %s159 = sphi 0, %s161
      %s162 = sphi 0, %s159
      %s163 = sphi 0, %s162
      %s179 = sphi 0, %s163
    $region4: #{tpu_custom_call.1} parent=1 // loop_header_branch
      %21 = sbr.rel (%p19) target = $region8
    $region5: #{tpu_custom_call.1} parent=1 // loop_body
      %s23 = ssub.s32 %s18, 1
      %s24 = ssub.s32 %s18, 2
      %s25 = sadd.s32 %s18, 1
      %s26 = ssub.s32 %s18, %s25
      %p27 = scmp.eq.s32.totalorder %s26, 0
      %s29 = sadd.s32 %s28, 1
      %s30 = scalar_select %p27, %s28, %s29
      %p33 = pneg %p27
      %p34 = scmp.eq.s32.totalorder %s18, 1
      %p35 = por %p33, %p34
      %p36 = scmp.ne.s32.totalorder %s28, %s31
      %p37 = scmp.eq.s32.totalorder %s18, 0
      %p38 = por %p36, %p37
      %p39 = scmp.ne.s32.totalorder %s28, %s31
      %p40 = scmp.eq.s32.totalorder %s23, 1
      %p41 = por %p39, %p40
      %p42 = scmp.ne.s32.totalorder %s31, %s32
      %p43 = scmp.eq.s32.totalorder %s23, 0
      %p44 = por %p42, %p43
      %p45 = scmp.ne.s32.totalorder %s31, %s32
      %p46 = scmp.eq.s32.totalorder %s24, 1
      %p47 = por %p45, %p46
      %p49 = scmp.ne.s32.totalorder %s32, %s48
      %p50 = scmp.eq.s32.totalorder %s24, 0
      %p51 = por %p49, %p50
      %s53 = sadd.s32 %s52, 1
      %p56 = scmp.eq.s32.totalorder %s18, 1
      %p57 = scmp.ne.s32.totalorder %s52, %s54
      %p58 = scmp.eq.s32.totalorder %s18, 0
      %p59 = por %p57, %p58
      %p60 = scmp.ne.s32.totalorder %s52, %s54
      %p61 = scmp.eq.s32.totalorder %s23, 1
      %p62 = por %p60, %p61
      %p63 = scmp.ne.s32.totalorder %s54, %s55
      %p64 = scmp.eq.s32.totalorder %s23, 0
      %p65 = por %p63, %p64
      %p66 = scmp.ne.s32.totalorder %s54, %s55
      %p67 = scmp.eq.s32.totalorder %s24, 1
      %p68 = por %p66, %p67
      %p70 = scmp.ne.s32.totalorder %s55, %s69
      %p71 = scmp.eq.s32.totalorder %s24, 0
      %p72 = por %p70, %p71
      %s74 = sadd.s32 %s73, 1
      %p77 = scmp.eq.s32.totalorder %s18, 1
      %p78 = scmp.ne.s32.totalorder %s73, %s75
      %p79 = scmp.eq.s32.totalorder %s18, 0
      %p80 = por %p78, %p79
      %p81 = scmp.ne.s32.totalorder %s73, %s75
      %p82 = scmp.eq.s32.totalorder %s23, 1
      %p83 = por %p81, %p82
      %p84 = scmp.ne.s32.totalorder %s75, %s76
      %p85 = scmp.eq.s32.totalorder %s23, 0
      %p86 = por %p84, %p85
      %p87 = scmp.ne.s32.totalorder %s75, %s76
      %p88 = scmp.eq.s32.totalorder %s24, 1
      %p89 = por %p87, %p88
      %p91 = scmp.ne.s32.totalorder %s76, %s90
      %p92 = scmp.eq.s32.totalorder %s24, 0
      %p93 = por %p91, %p92
      %s95 = sadd.s32 %s94, 1
      %p98 = scmp.eq.s32.totalorder %s18, 1
      %p99 = scmp.ne.s32.totalorder %s94, %s96
      %p100 = scmp.eq.s32.totalorder %s18, 0
      %p101 = por %p99, %p100
      %p102 = scmp.ne.s32.totalorder %s94, %s96
      %p103 = scmp.eq.s32.totalorder %s23, 1
      %p104 = por %p102, %p103
      %p105 = scmp.ne.s32.totalorder %s96, %s97
      %p106 = scmp.eq.s32.totalorder %s23, 0
      %p107 = por %p105, %p106
      %p108 = scmp.ne.s32.totalorder %s96, %s97
      %p109 = scmp.eq.s32.totalorder %s24, 1
      %p110 = por %p108, %p109
      %p112 = scmp.ne.s32.totalorder %s97, %s111
      %p113 = scmp.eq.s32.totalorder %s24, 0
      %p114 = por %p112, %p113
      %s116 = sadd.s32 %s115, 1
      %p119 = scmp.eq.s32.totalorder %s18, 1
      %p120 = scmp.ne.s32.totalorder %s115, %s117
      %p121 = scmp.eq.s32.totalorder %s18, 0
      %p122 = por %p120, %p121
      %p123 = scmp.ne.s32.totalorder %s115, %s117
      %p124 = scmp.eq.s32.totalorder %s23, 1
      %p125 = por %p123, %p124
      %p126 = scmp.ne.s32.totalorder %s117, %s118
      %p127 = scmp.eq.s32.totalorder %s23, 0
      %p128 = por %p126, %p127
      %p129 = scmp.ne.s32.totalorder %s117, %s118
      %p130 = scmp.eq.s32.totalorder %s24, 1
      %p131 = por %p129, %p130
      %p133 = scmp.ne.s32.totalorder %s118, %s132
      %p134 = scmp.eq.s32.totalorder %s24, 0
      %p135 = por %p133, %p134
      %s137 = sadd.s32 %s136, 1
      %p140 = scmp.eq.s32.totalorder %s18, 1
      %p141 = scmp.ne.s32.totalorder %s136, %s138
      %p142 = scmp.eq.s32.totalorder %s18, 0
      %p143 = por %p141, %p142
      %p144 = scmp.ne.s32.totalorder %s136, %s138
      %p145 = scmp.eq.s32.totalorder %s23, 1
      %p146 = por %p144, %p145
      %p147 = scmp.ne.s32.totalorder %s138, %s139
      %p148 = scmp.eq.s32.totalorder %s23, 0
      %p149 = por %p147, %p148
      %p150 = scmp.ne.s32.totalorder %s138, %s139
      %p151 = scmp.eq.s32.totalorder %s24, 1
      %p152 = por %p150, %p151
      %p154 = scmp.ne.s32.totalorder %s139, %s153
      %p155 = scmp.eq.s32.totalorder %s24, 0
      %p156 = por %p154, %p155
      %s157 = ssub.s32 %s18, %s25
      %p158 = scmp.eq.s32.totalorder %s157, 0
      %s160 = sadd.s32 %s159, 1
      %s161 = scalar_select %p158, %s159, %s160
      %p164 = pneg %p158
      %p165 = scmp.eq.s32.totalorder %s18, 1
      %p166 = por %p164, %p165
      %p167 = scmp.ne.s32.totalorder %s159, %s162
      %p168 = scmp.eq.s32.totalorder %s18, 0
      %p169 = por %p167, %p168
      %p170 = scmp.ne.s32.totalorder %s159, %s162
      %p171 = scmp.eq.s32.totalorder %s23, 1
      %p172 = por %p170, %p171
      %p173 = scmp.ne.s32.totalorder %s162, %s163
      %p174 = scmp.eq.s32.totalorder %s23, 0
      %p175 = por %p173, %p174
      %p176 = scmp.ne.s32.totalorder %s162, %s163
      %p177 = scmp.eq.s32.totalorder %s24, 1
      %p178 = por %p176, %p177
      %p180 = scmp.ne.s32.totalorder %s163, %s179
      %p181 = scmp.eq.s32.totalorder %s24, 0
      %p182 = por %p180, %p181
      %p183 = scmp.le.s32.totalorder 1, %s18
      %p184 = scmp.lt.s32.totalorder %s18, 3
      %p185 = pnand %p183, %p184
      %p186 = pneg %p185
      // Predicated region
      $region9: #{tpu_custom_call.1} parent=5 // pred_check
        _
      $region10: #{tpu_custom_call.1} parent=5 // pred_check_branch
        %188 = sbr.rel (%p185) target = $region12
      $region11: #{tpu_custom_call.1} parent=5 // pred_region
        %s189 = ssub.s32 %s18, 1
        // Predicated region
        $region13: #{tpu_custom_call.1} parent=11 // pred_check
          %p190 = pneg %p65
        $region14: #{tpu_custom_call.1} parent=11 // pred_check_branch
          %192 = sbr.rel (%p190) target = $region16
        $region15: #{tpu_custom_call.1} parent=11 // pred_region
          _
        $region16: #{tpu_custom_call.1} parent=11 // pred_fallthru
          _
        // Predicated region
        $region17: #{tpu_custom_call.1} parent=11 // pred_check
          %p193 = pneg %p86
        $region18: #{tpu_custom_call.1} parent=11 // pred_check_branch
          %195 = sbr.rel (%p193) target = $region20
        $region19: #{tpu_custom_call.1} parent=11 // pred_region
          _
        $region20: #{tpu_custom_call.1} parent=11 // pred_fallthru
          _
        // Predicated region
        $region21: #{tpu_custom_call.1} parent=11 // pred_check
          %p196 = pneg %p107
        $region22: #{tpu_custom_call.1} parent=11 // pred_check_branch
          %198 = sbr.rel (%p196) target = $region24
        $region23: #{tpu_custom_call.1} parent=11 // pred_region
          _
        $region24: #{tpu_custom_call.1} parent=11 // pred_fallthru
          _
        // Predicated region
        $region25: #{tpu_custom_call.1} parent=11 // pred_check
          %p199 = pneg %p128
        $region26: #{tpu_custom_call.1} parent=11 // pred_check_branch
          %201 = sbr.rel (%p199) target = $region28
        $region27: #{tpu_custom_call.1} parent=11 // pred_region
          _
        $region28: #{tpu_custom_call.1} parent=11 // pred_fallthru
          _
        // Predicated region
        $region29: #{tpu_custom_call.1} parent=11 // pred_check
          %p202 = pneg %p149
        $region30: #{tpu_custom_call.1} parent=11 // pred_check_branch
          %204 = sbr.rel (%p202) target = $region32
        $region31: #{tpu_custom_call.1} parent=11 // pred_region
          _
        $region32: #{tpu_custom_call.1} parent=11 // pred_fallthru
          _
      $region12: #{tpu_custom_call.1} parent=5 // pred_fallthru
        _
      %p205 = scmp.lt.s32.totalorder %s18, 2
      // Predicated region
      $region33: #{tpu_custom_call.1} parent=5 // pred_check
        %p206 = pneg %p205
      $region34: #{tpu_custom_call.1} parent=5 // pred_check_branch
        %208 = sbr.rel (%p206) target = $region36
      $region35: #{tpu_custom_call.1} parent=5 // pred_region
        // Predicated region
        $region37: #{tpu_custom_call.1} parent=35 // pred_check
          %p209 = pneg %p38
        $region38: #{tpu_custom_call.1} parent=35 // pred_check_branch
          %211 = sbr.rel (%p209) target = $region40
        $region39: #{tpu_custom_call.1} parent=35 // pred_region
          %s212 = sand.u32 %s28, 1
          %s213 = scalar_lea.sflag [#allocation6], %s212
          %s214 = sand.u32 %s28, 1
          %s215 = smul.addr %s214, 32
          %s216 = scalar_lea.vmem [#allocation5], %s215
          %s218 = ssub.s32 512, 512
          %219 = vsyncadd %s213, %s218
          %s220 = smul.addr %s18, 4
          %s221 = smul.addr %s220, 128
          %s222 = scalar_lea.hbm %s0, %s221
          %s223 = sshll.u32 %s216, 4
          %s224 = int_to_ptr.vmem [resolvable:$true] %s223
          %229 = dma.hbm_to_vmem [thread:$0]  %s222, 512, %s224, %s213, 256, 256, 16
        $region40: #{tpu_custom_call.1} parent=35 // pred_fallthru
          _
      $region36: #{tpu_custom_call.1} parent=5 // pred_fallthru
        _
      %p230 = scmp.le.s32.totalorder 1, %s18
      %p231 = scmp.lt.s32.totalorder %s18, 3
      %p232 = pnand %p230, %p231
      %p233 = pneg %p232
      // Predicated region
      $region41: #{tpu_custom_call.1} parent=5 // pred_check
        _
      $region42: #{tpu_custom_call.1} parent=5 // pred_check_branch
        %235 = sbr.rel (%p232) target = $region44
      $region43: #{tpu_custom_call.1} parent=5 // pred_region
        %s236 = ssub.s32 %s18, 1
        %s237 = sand.u32 %s31, 1
        %s238 = scalar_lea.sflag [#allocation6], %s237
        %s239 = sand.u32 %s31, 1
        %s240 = smul.addr %s239, 32
        %s241 = scalar_lea.vmem [#allocation5], %s240
        // Predicated region
        $region45: #{tpu_custom_call.1} parent=43 // pred_check
          %p242 = pneg %p44
        $region46: #{tpu_custom_call.1} parent=43 // pred_check_branch
          %244 = sbr.rel (%p242) target = $region48
        $region47: #{tpu_custom_call.1} parent=43 // pred_region
          %245 = dma.done %s238, 512
        $region48: #{tpu_custom_call.1} parent=43 // pred_fallthru
          _
        %s246 = sand.u32 %s31, 1
        %s247 = scalar_lea.sflag [#allocation6], %s246
        %s248 = sand.u32 %s31, 1
        %s249 = smul.addr %s248, 32
        %s250 = scalar_lea.vmem [#allocation5], %s249
        %p251 = pneg %p44
        %p252 = pneg %p41
        %p253 = pneg %p65
        %p254 = pneg %p62
        %p255 = pneg %p86
        %p256 = pneg %p83
        %p257 = pneg %p107
        %p258 = pneg %p104
        %p259 = pneg %p128
        %p260 = pneg %p125
        %p261 = pneg %p149
        %p262 = pneg %p146
        %p263 = pneg %p175
        %p264 = pneg %p172
        %s265 = sand.u32 %s162, 1
        %s266 = scalar_lea.sflag [#allocation7], %s265
        %s267 = sand.u32 %s162, 1
        %s268 = smul.addr %s267, 16
        %s269 = scalar_lea.vmem [#allocation8], %s268
        %271 = vst [vmem:[#allocation2] sm:$0xff] 0
        %272 = vst [vmem:[#allocation2 + $0x18] sm:$0xff] 0
        %v273 = vld [vmem:[%s241] sm:$0xff]
        %v274 = vld [vmem:[%s241 + $0x8] sm:$0xff]
        %v275 = vld [vmem:[%s241 + $0x10] sm:$0xff]
        %v276 = vld [vmem:[%s241 + $0x18] sm:$0xff]
        %v277 = vpack.c.bf16 %v275, %v273
        %v278 = vpack.c.bf16 %v276, %v274
        %279 = vst [vmem:[#allocation2 + $0x8] sm:$0xff] %v277
        %280 = vst [vmem:[#allocation2 + $0x10] sm:$0xff] %v278
        %v281 = vld [vmem:[%s5] sm:$0xff]
        %v282 = vld [vmem:[%s5 + $0x8] sm:$0x11]
        %v283 = vld [vmem:[#allocation2] sm:$0xff]
        %v284 = vld [vmem:[#allocation2 + $0x8] sm:$0xff]
        %v285 = vld [vmem:[#allocation2 + $0x10] sm:$0xff]
        %v287 = vunpack.c.l.b16 %v281
        %v288 = vunpack.c.h.b16 %v281
        %v289 = vpack.c.b16 %v287, %v287
        %v290 = vpack.c.b16 %v288, %v288
        %v292 = vpack.i.b16 %v289, %v289
        %v294 = vlaneseq
        %v295 = vshrl.u32 %v294, 7
        %v296 = vsub.s32 0, %v295
        %v297 = vrot.slane %v292, %v296
        %v299 = vpack.i.b16 %v290, %v290
        %v301 = vlaneseq
        %v302 = vshrl.u32 %v301, 7
        %v303 = vsub.s32 0, %v302
        %v304 = vrot.slane %v299, %v303
        %307 = vrot.lane.b32.xlu0 %v297, 111
        %v308 = vpop.permute.xlu0 %307
        %309 = vrot.lane.b32.xlu0 %v304, 111
        %v310 = vpop.permute.xlu0 %309
        %vm311 = vcmask 908288
        %v312 = vsel %vm311, %v308, %v310
        %v316 = vmul.bf16 %v283, %v308
        %v317 = vmul.bf16 %v284, %v312
        %v318 = vmul.bf16 %v285, %v310
        %322 = vrot.lane.b32.xlu0 %v316, 17
        %v323 = vpop.permute.xlu0 %322
        %324 = vrot.lane.b32.xlu0 %v317, 17
        %v325 = vpop.permute.xlu0 %324
        %326 = vrot.lane.b32.xlu0 %v318, 17
        %v327 = vpop.permute.xlu0 %326
        %vm328 = vcmask 138240
        %v329 = vsel %vm328, %v323, %v325
        %v330 = vsel %vm328, %v325, %v327
        %333 = vst [vmem:[#allocation4] sm:$0xff] %v329
        %334 = vst [vmem:[#allocation4 + $0x8] sm:$0xff] %v330
        %v335 = vld [vmem:[#allocation2] sm:$0xff]
        %v336 = vld [vmem:[#allocation2 + $0x8] sm:$0xff]
        %v337 = vld [vmem:[#allocation2 + $0x10] sm:$0xff]
        %v338 = vshrl.u32 %v289, 16
        %v339 = vpack.i.b16 %v338, %v338
        %v341 = vlaneseq
        %v342 = vshrl.u32 %v341, 7
        %v343 = vsub.s32 0, %v342
        %v344 = vrot.slane %v339, %v343
        %v345 = vshrl.u32 %v290, 16
        %v346 = vpack.i.b16 %v345, %v345
        %v348 = vlaneseq
        %v349 = vshrl.u32 %v348, 7
        %v350 = vsub.s32 0, %v349
        %v351 = vrot.slane %v346, %v350
        %354 = vrot.lane.b32.xlu0 %v344, 112
        %v355 = vpop.permute.xlu0 %354
        %356 = vrot.lane.b32.xlu0 %v351, 112
        %v357 = vpop.permute.xlu0 %356
        %vm358 = vcmask 916480
        %v359 = vsel %vm358, %v355, %v357
        %v363 = vmul.bf16 %v335, %v355
        %v364 = vmul.bf16 %v336, %v359
        %v365 = vmul.bf16 %v337, %v357
        %369 = vrot.lane.b32.xlu0 %v363, 16
        %v370 = vpop.permute.xlu0 %369
        %371 = vrot.lane.b32.xlu0 %v364, 16
        %v372 = vpop.permute.xlu0 %371
        %373 = vrot.lane.b32.xlu0 %v365, 16
        %v374 = vpop.permute.xlu0 %373
        %vm375 = vcmask 130048
        %v376 = vsel %vm375, %v370, %v372
        %v377 = vsel %vm375, %v372, %v374
        %380 = vst [vmem:[#allocation4 + $0x10] sm:$0xff] %v376
        %381 = vst [vmem:[#allocation4 + $0x18] sm:$0xff] %v377
        %v382 = vld [vmem:[#allocation2] sm:$0xff]
        %v383 = vld [vmem:[#allocation2 + $0x8] sm:$0xff]
        %v384 = vld [vmem:[#allocation2 + $0x10] sm:$0xff]
        %v385 = vlaneseq
        %v386 = vshrl.u32 %v385, 7
        %v387 = vsub.s32 1, %v386
        %v388 = vrot.slane %v292, %v387
        %v389 = vlaneseq
        %v390 = vshrl.u32 %v389, 7
        %v391 = vsub.s32 1, %v390
        %v392 = vrot.slane %v299, %v391
        %395 = vrot.lane.b32.xlu0 %v388, 113
        %v396 = vpop.permute.xlu0 %395
        %397 = vrot.lane.b32.xlu0 %v392, 113
        %v398 = vpop.permute.xlu0 %397
        %vm399 = vcmask 924672
        %v400 = vsel %vm399, %v396, %v398
        %v404 = vmul.bf16 %v382, %v396
        %v405 = vmul.bf16 %v383, %v400
        %v406 = vmul.bf16 %v384, %v398
        %410 = vrot.lane.b32.xlu0 %v404, 15
        %v411 = vpop.permute.xlu0 %410
        %412 = vrot.lane.b32.xlu0 %v405, 15
        %v413 = vpop.permute.xlu0 %412
        %414 = vrot.lane.b32.xlu0 %v406, 15
        %v415 = vpop.permute.xlu0 %414
        %vm416 = vcmask 121856
        %v417 = vsel %vm416, %v411, %v413
        %v418 = vsel %vm416, %v413, %v415
        %421 = vst [vmem:[#allocation4 + $0x20] sm:$0xff] %v417
        %422 = vst [vmem:[#allocation4 + $0x28] sm:$0xff] %v418
        %v423 = vld [vmem:[#allocation2] sm:$0xff]
        %v424 = vld [vmem:[#allocation2 + $0x8] sm:$0xff]
        %v425 = vld [vmem:[#allocation2 + $0x10] sm:$0xff]
        %v426 = vlaneseq
        %v427 = vshrl.u32 %v426, 7
        %v428 = vsub.s32 1, %v427
        %v429 = vrot.slane %v339, %v428
        %v430 = vlaneseq
        %v431 = vshrl.u32 %v430, 7
        %v432 = vsub.s32 1, %v431
        %v433 = vrot.slane %v346, %v432
        %436 = vrot.lane.b32.xlu0 %v429, 127
        %v437 = vpop.permute.xlu0 %436
        %438 = vrot.lane.b32.xlu0 %v433, 127
        %v439 = vpop.permute.xlu0 %438
        %vm440 = vcmask 1039360
        %v441 = vsel %vm440, %v437, %v439
        %v445 = vmul.bf16 %v423, %v437
        %v446 = vmul.bf16 %v424, %v441
        %v447 = vmul.bf16 %v425, %v439
        %451 = vrot.lane.b32.xlu0 %v445, 1
        %v452 = vpop.permute.xlu0 %451
        %453 = vrot.lane.b32.xlu0 %v446, 1
        %v454 = vpop.permute.xlu0 %453
        %455 = vrot.lane.b32.xlu0 %v447, 1
        %v456 = vpop.permute.xlu0 %455
        %vm457 = vcmask 7168
        %v458 = vsel %vm457, %v452, %v454
        %v459 = vsel %vm457, %v454, %v456
        %462 = vst [vmem:[#allocation4 + $0x30] sm:$0xff] %v458
        %463 = vst [vmem:[#allocation4 + $0x38] sm:$0xff] %v459
        %v464 = vld [vmem:[#allocation2 + $0x8] sm:$0xff]
        %v465 = vld [vmem:[#allocation2 + $0x10] sm:$0xff]
        %v466 = vlaneseq
        %v467 = vshrl.u32 %v466, 7
        %v468 = vsub.s32 2, %v467
        %v469 = vrot.slane %v292, %v468
        %v470 = vlaneseq
        %v471 = vshrl.u32 %v470, 7
        %v472 = vsub.s32 2, %v471
        %v473 = vrot.slane %v299, %v472
        %v474 = vmul.bf16 %v464, %v469
        %v475 = vmul.bf16 %v465, %v473
        %476 = vst [vmem:[#allocation4 + $0x40] sm:$0xff] %v474
        %477 = vst [vmem:[#allocation4 + $0x48] sm:$0xff] %v475
        %v478 = vld [vmem:[#allocation2 + $0x8] sm:$0xff]
        %v479 = vld [vmem:[#allocation2 + $0x10] sm:$0xff]
        %v480 = vld [vmem:[#allocation2 + $0x18] sm:$0xff]
        %v481 = vlaneseq
        %v482 = vshrl.u32 %v481, 7
        %v483 = vsub.s32 2, %v482
        %v484 = vrot.slane %v339, %v483
        %v485 = vlaneseq
        %v486 = vshrl.u32 %v485, 7
        %v487 = vsub.s32 2, %v486
        %v488 = vrot.slane %v346, %v487
        %491 = vrot.lane.b32.xlu0 %v484, 1
        %v492 = vpop.permute.xlu0 %491
        %493 = vrot.lane.b32.xlu0 %v488, 1
        %v494 = vpop.permute.xlu0 %493
        %v495 = vsel %vm457, %v492, %v494
        %v499 = vmul.bf16 %v478, %v492
        %v500 = vmul.bf16 %v479, %v495
        %v501 = vmul.bf16 %v480, %v494
        %505 = vrot.lane.b32.xlu0 %v499, 127
        %v506 = vpop.permute.xlu0 %505
        %507 = vrot.lane.b32.xlu0 %v500, 127
        %v508 = vpop.permute.xlu0 %507
        %509 = vrot.lane.b32.xlu0 %v501, 127
        %v510 = vpop.permute.xlu0 %509
        %v511 = vsel %vm440, %v506, %v508
        %v512 = vsel %vm440, %v508, %v510
        %515 = vst [vmem:[#allocation4 + $0x50] sm:$0xff] %v511
        %516 = vst [vmem:[#allocation4 + $0x58] sm:$0xff] %v512
        %v517 = vld [vmem:[#allocation2 + $0x8] sm:$0xff]
        %v518 = vld [vmem:[#allocation2 + $0x10] sm:$0xff]
        %v519 = vld [vmem:[#allocation2 + $0x18] sm:$0xff]
        %v520 = vlaneseq
        %v521 = vshrl.u32 %v520, 7
        %v522 = vsub.s32 3, %v521
        %v523 = vrot.slane %v292, %v522
        %v524 = vlaneseq
        %v525 = vshrl.u32 %v524, 7
        %v526 = vsub.s32 3, %v525
        %v527 = vrot.slane %v299, %v526
        %530 = vrot.lane.b32.xlu0 %v523, 15
        %v531 = vpop.permute.xlu0 %530
        %532 = vrot.lane.b32.xlu0 %v527, 15
        %v533 = vpop.permute.xlu0 %532
        %v534 = vsel %vm416, %v531, %v533
        %v538 = vmul.bf16 %v517, %v531
        %v539 = vmul.bf16 %v518, %v534
        %v540 = vmul.bf16 %v519, %v533
        %544 = vrot.lane.b32.xlu0 %v538, 113
        %v545 = vpop.permute.xlu0 %544
        %546 = vrot.lane.b32.xlu0 %v539, 113
        %v547 = vpop.permute.xlu0 %546
        %548 = vrot.lane.b32.xlu0 %v540, 113
        %v549 = vpop.permute.xlu0 %548
        %v550 = vsel %vm399, %v545, %v547
        %v551 = vsel %vm399, %v547, %v549
        %554 = vst [vmem:[#allocation4 + $0x60] sm:$0xff] %v550
        %555 = vst [vmem:[#allocation4 + $0x68] sm:$0xff] %v551
        %v556 = vld [vmem:[#allocation2 + $0x8] sm:$0xff]
        %v557 = vld [vmem:[#allocation2 + $0x10] sm:$0xff]
        %v558 = vld [vmem:[#allocation2 + $0x18] sm:$0xff]
        %v559 = vlaneseq
        %v560 = vshrl.u32 %v559, 7
        %v561 = vsub.s32 3, %v560
        %v562 = vrot.slane %v339, %v561
        %v563 = vlaneseq
        %v564 = vshrl.u32 %v563, 7
        %v565 = vsub.s32 3, %v564
        %v566 = vrot.slane %v346, %v565
        %569 = vrot.lane.b32.xlu0 %v562, 16
        %v570 = vpop.permute.xlu0 %569
        %571 = vrot.lane.b32.xlu0 %v566, 16
        %v572 = vpop.permute.xlu0 %571
        %v573 = vsel %vm375, %v570, %v572
        %v577 = vmul.bf16 %v556, %v570
        %v578 = vmul.bf16 %v557, %v573
        %v579 = vmul.bf16 %v558, %v572
        %583 = vrot.lane.b32.xlu0 %v577, 112
        %v584 = vpop.permute.xlu0 %583
        %585 = vrot.lane.b32.xlu0 %v578, 112
        %v586 = vpop.permute.xlu0 %585
        %587 = vrot.lane.b32.xlu0 %v579, 112
        %v588 = vpop.permute.xlu0 %587
        %v589 = vsel %vm358, %v584, %v586
        %v590 = vsel %vm358, %v586, %v588
        %593 = vst [vmem:[#allocation4 + $0x70] sm:$0xff] %v589
        %594 = vst [vmem:[#allocation4 + $0x78] sm:$0xff] %v590
        %v595 = vld [vmem:[#allocation2 + $0x8] sm:$0xff]
        %v596 = vld [vmem:[#allocation2 + $0x10] sm:$0xff]
        %v597 = vld [vmem:[#allocation2 + $0x18] sm:$0xff]
        %v599 = vunpack.c.l.b16 %v282
        %v600 = vunpack.c.h.b16 %v282
        %v601 = vpack.c.b16 %v599, %v599
        %v602 = vpack.c.b16 %v600, %v600
        %v604 = vpack.i.b16 %v601, %v601
        %v606 = vlaneseq
        %v607 = vshrl.u32 %v606, 7
        %v608 = vsub.s32 0, %v607
        %v609 = vrot.slane %v604, %v608
        %v611 = vpack.i.b16 %v602, %v602
        %v613 = vlaneseq
        %v614 = vshrl.u32 %v613, 7
        %v615 = vsub.s32 0, %v614
        %v616 = vrot.slane %v611, %v615
        %619 = vrot.lane.b32.xlu0 %v609, 17
        %v620 = vpop.permute.xlu0 %619
        %621 = vrot.lane.b32.xlu0 %v616, 17
        %v622 = vpop.permute.xlu0 %621
        %v623 = vsel %vm328, %v620, %v622
        %v627 = vmul.bf16 %v595, %v620
        %v628 = vmul.bf16 %v596, %v623
        %v629 = vmul.bf16 %v597, %v622
        %633 = vrot.lane.b32.xlu0 %v627, 111
        %v634 = vpop.permute.xlu0 %633
        %635 = vrot.lane.b32.xlu0 %v628, 111
        %v636 = vpop.permute.xlu0 %635
        %637 = vrot.lane.b32.xlu0 %v629, 111
        %v638 = vpop.permute.xlu0 %637
        %v639 = vsel %vm311, %v634, %v636
        %v640 = vsel %vm311, %v636, %v638
        %643 = vst [vmem:[#allocation4 + $0x80] sm:$0xff] %v639
        %644 = vst [vmem:[#allocation4 + $0x88] sm:$0xff] %v640
        %v645 = vld [vmem:[%s1] sm:$0xff]
        %v646 = vld [vmem:[%s1 + $0x8] sm:$0xff]
        %v647 = vld [vmem:[#allocation4] sm:$0xff]
        %v648 = vld [vmem:[#allocation4 + $0x8] sm:$0xff]
        %v649 = vld [vmem:[#allocation4 + $0x10] sm:$0xff]
        %v650 = vld [vmem:[#allocation4 + $0x18] sm:$0xff]
        %v651 = vld [vmem:[#allocation4 + $0x20] sm:$0xff]
        %v652 = vld [vmem:[#allocation4 + $0x28] sm:$0xff]
        %v653 = vld [vmem:[#allocation4 + $0x30] sm:$0xff]
        %v654 = vld [vmem:[#allocation4 + $0x38] sm:$0xff]
        %v655 = vld [vmem:[#allocation4 + $0x40] sm:$0xff]
        %v656 = vld [vmem:[#allocation4 + $0x48] sm:$0xff]
        %v657 = vld [vmem:[#allocation4 + $0x50] sm:$0xff]
        %v658 = vld [vmem:[#allocation4 + $0x58] sm:$0xff]
        %v659 = vld [vmem:[#allocation4 + $0x60] sm:$0xff]
        %v660 = vld [vmem:[#allocation4 + $0x68] sm:$0xff]
        %v661 = vld [vmem:[#allocation4 + $0x70] sm:$0xff]
        %v662 = vld [vmem:[#allocation4 + $0x78] sm:$0xff]
        %v663 = vld [vmem:[#allocation4 + $0x80] sm:$0xff]
        %v664 = vld [vmem:[#allocation4 + $0x88] sm:$0xff]
        %v665 = vld [vmem:[%s3] sm:$0xff]
        %v666 = vld [vmem:[%s3 + $0x8] sm:$0xff]
        %668 = vset.pattern.permute.xlu0 0
        %669 = vperm.xlu0 %668, %v665
        %v670 = vpop.permute.xlu0 %669
        %673 = vset.pattern.permute.xlu0 0
        %674 = vperm.xlu0 %673, %v666
        %v675 = vpop.permute.xlu0 %674
        %v679 = vunpack.c.l.b16 %v645
        %v680 = vunpack.c.h.b16 %v645
        %v681 = vunpack.c.l.b16 %v646
        %v682 = vunpack.c.h.b16 %v646
        %v683 = vpack.c.b16 %v681, %v679
        %v684 = vpack.c.b16 %v682, %v680
        %vm686 = vcmask 130048
        %v688 = vsel %vm686, %v684, 0
        %690 = vmatprep.subr.bf16.mxu0 %v648
        %691 = vmatpush1.bf16.msra.mxu0 %v647
        %692 = vmatprep.subr.bf16.mxu0 %v650
        %693 = vmatpush1.bf16.msra.mxu0 %v649
        %694 = vmatprep.subr.bf16.mxu0 %v652
        %695 = vmatpush1.bf16.msra.mxu0 %v651
        %696 = vmatprep.subr.bf16.mxu0 %v654
        %697 = vmatpush1.bf16.msra.mxu0 %v653
        %698 = vmatprep.subr.bf16.mxu0 %v656
        %699 = vmatpush1.bf16.msra.mxu0 %v655
        %700 = vmatprep.subr.bf16.mxu0 %v658
        %701 = vmatpush1.bf16.msra.mxu0 %v657
        %702 = vmatprep.subr.bf16.mxu0 %v660
        %703 = vmatpush1.bf16.msra.mxu0 %v659
        %704 = vmatprep.subr.bf16.mxu0 %v662
        %705 = vmatpush1.bf16.msra.mxu0 %v661
        %706 = vmatprep.subr.bf16.mxu0 %v664
        %707 = vmatpush1.bf16.msra.mxu0 %v663
        %708 = vmatprep.subr.bf16.mxu0 0
        %709 = vmatpush1.bf16.msra.mxu0 0
        %710 = vmatprep.subr.bf16.mxu0 0
        %711 = vmatpush1.bf16.msra.mxu0 0
        %712 = vmatprep.subr.bf16.mxu0 0
        %713 = vmatpush1.bf16.msra.mxu0 0
        %714 = vmatprep.subr.bf16.mxu0 0
        %715 = vmatpush1.bf16.msra.mxu0 0
        %716 = vmatprep.subr.bf16.mxu0 0
        %717 = vmatpush1.bf16.msra.mxu0 0
        %718 = vmatprep.subr.bf16.mxu0 0
        %719 = vmatpush1.bf16.msra.mxu0 0
        %720 = vmatprep.subr.bf16.mxu0 0
        %721 = vmatpush1.bf16.msra.mxu0 0
        %722 = vmatprep.mubr.bf16.mxu0 %v688
        %723 = vmatmul.mubr.bf16.gmra.mrb[0].mxu0 %v683
        %v724 = vpop.f32.mrb[0].mxu0
        %v725 = vadd.f32 %v670, %v724
        %v726 = vpop.f32.mrb[0].mxu0
        %v727 = vadd.f32 %v670, %v726
        %v728 = vpop.f32.mrb[0].mxu0
        %v729 = vadd.f32 %v675, %v728
        %v730 = vpop.f32.mrb[0].mxu0
        %v731 = vadd.f32 %v675, %v730
        %732 = vdwg.mxu0
        %v733 = vmax.f32 %v725, 0.0
        %v734 = vmax.f32 %v727, 0.0
        %v735 = vmax.f32 %v729, 0.0
        %v736 = vmax.f32 %v731, 0.0
        %737 = vst [vmem:[#allocation3] sm:$0xff] 0
        %738 = vst [vmem:[#allocation3 + $0x18] sm:$0xff] 0
        %v739 = vpack.c.bf16 %v735, %v733
        %v740 = vpack.c.bf16 %v736, %v734
        %741 = vst [vmem:[#allocation3 + $0x8] sm:$0xff] %v739
        %742 = vst [vmem:[#allocation3 + $0x10] sm:$0xff] %v740
        %v743 = vld [vmem:[#allocation3] sm:$0xff]
        %v744 = vld [vmem:[#allocation3 + $0x8] sm:$0xff]
        %v745 = vld [vmem:[#allocation3 + $0x10] sm:$0xff]
        %v746 = vmul.bf16 %v743, %v308
        %v747 = vmul.bf16 %v744, %v312
        %v748 = vmul.bf16 %v745, %v310
        %752 = vrot.lane.b32.xlu0 %v746, 17
        %v753 = vpop.permute.xlu0 %752
        %754 = vrot.lane.b32.xlu0 %v747, 17
        %v755 = vpop.permute.xlu0 %754
        %756 = vrot.lane.b32.xlu0 %v748, 17
        %v757 = vpop.permute.xlu0 %756
        %v758 = vsel %vm328, %v753, %v755
        %v759 = vsel %vm328, %v755, %v757
        %762 = vst [vmem:[#allocation4] sm:$0xff] %v758
        %763 = vst [vmem:[#allocation4 + $0x8] sm:$0xff] %v759
        %v764 = vld [vmem:[#allocation3] sm:$0xff]
        %v765 = vld [vmem:[#allocation3 + $0x8] sm:$0xff]
        %v766 = vld [vmem:[#allocation3 + $0x10] sm:$0xff]
        %v767 = vmul.bf16 %v764, %v355
        %v768 = vmul.bf16 %v765, %v359
        %v769 = vmul.bf16 %v766, %v357
        %773 = vrot.lane.b32.xlu0 %v767, 16
        %v774 = vpop.permute.xlu0 %773
        %775 = vrot.lane.b32.xlu0 %v768, 16
        %v776 = vpop.permute.xlu0 %775
        %777 = vrot.lane.b32.xlu0 %v769, 16
        %v778 = vpop.permute.xlu0 %777
        %v779 = vsel %vm375, %v774, %v776
        %v780 = vsel %vm375, %v776, %v778
        %783 = vst [vmem:[#allocation4 + $0x10] sm:$0xff] %v779
        %784 = vst [vmem:[#allocation4 + $0x18] sm:$0xff] %v780
        %v785 = vld [vmem:[#allocation3] sm:$0xff]
        %v786 = vld [vmem:[#allocation3 + $0x8] sm:$0xff]
        %v787 = vld [vmem:[#allocation3 + $0x10] sm:$0xff]
        %v788 = vmul.bf16 %v785, %v396
        %v789 = vmul.bf16 %v786, %v400
        %v790 = vmul.bf16 %v787, %v398
        %794 = vrot.lane.b32.xlu0 %v788, 15
        %v795 = vpop.permute.xlu0 %794
        %796 = vrot.lane.b32.xlu0 %v789, 15
        %v797 = vpop.permute.xlu0 %796
        %798 = vrot.lane.b32.xlu0 %v790, 15
        %v799 = vpop.permute.xlu0 %798
        %v800 = vsel %vm416, %v795, %v797
        %v801 = vsel %vm416, %v797, %v799
        %804 = vst [vmem:[#allocation4 + $0x20] sm:$0xff] %v800
        %805 = vst [vmem:[#allocation4 + $0x28] sm:$0xff] %v801
        %v806 = vld [vmem:[#allocation3] sm:$0xff]
        %v807 = vld [vmem:[#allocation3 + $0x8] sm:$0xff]
        %v808 = vld [vmem:[#allocation3 + $0x10] sm:$0xff]
        %v809 = vmul.bf16 %v806, %v437
        %v810 = vmul.bf16 %v807, %v441
        %v811 = vmul.bf16 %v808, %v439
        %815 = vrot.lane.b32.xlu0 %v809, 1
        %v816 = vpop.permute.xlu0 %815
        %817 = vrot.lane.b32.xlu0 %v810, 1
        %v818 = vpop.permute.xlu0 %817
        %819 = vrot.lane.b32.xlu0 %v811, 1
        %v820 = vpop.permute.xlu0 %819
        %v821 = vsel %vm457, %v816, %v818
        %v822 = vsel %vm457, %v818, %v820
        %825 = vst [vmem:[#allocation4 + $0x30] sm:$0xff] %v821
        %826 = vst [vmem:[#allocation4 + $0x38] sm:$0xff] %v822
        %v827 = vld [vmem:[#allocation3 + $0x8] sm:$0xff]
        %v828 = vld [vmem:[#allocation3 + $0x10] sm:$0xff]
        %v829 = vmul.bf16 %v827, %v469
        %v830 = vmul.bf16 %v828, %v473
        %831 = vst [vmem:[#allocation4 + $0x40] sm:$0xff] %v829
        %832 = vst [vmem:[#allocation4 + $0x48] sm:$0xff] %v830
        %v833 = vld [vmem:[#allocation3 + $0x8] sm:$0xff]
        %v834 = vld [vmem:[#allocation3 + $0x10] sm:$0xff]
        %v835 = vld [vmem:[#allocation3 + $0x18] sm:$0xff]
        %v836 = vmul.bf16 %v833, %v492
        %v837 = vmul.bf16 %v834, %v495
        %v838 = vmul.bf16 %v835, %v494
        %842 = vrot.lane.b32.xlu0 %v836, 127
        %v843 = vpop.permute.xlu0 %842
        %844 = vrot.lane.b32.xlu0 %v837, 127
        %v845 = vpop.permute.xlu0 %844
        %846 = vrot.lane.b32.xlu0 %v838, 127
        %v847 = vpop.permute.xlu0 %846
        %v848 = vsel %vm440, %v843, %v845
        %v849 = vsel %vm440, %v845, %v847
        %852 = vst [vmem:[#allocation4 + $0x50] sm:$0xff] %v848
        %853 = vst [vmem:[#allocation4 + $0x58] sm:$0xff] %v849
        %v854 = vld [vmem:[#allocation3 + $0x8] sm:$0xff]
        %v855 = vld [vmem:[#allocation3 + $0x10] sm:$0xff]
        %v856 = vld [vmem:[#allocation3 + $0x18] sm:$0xff]
        %v857 = vmul.bf16 %v854, %v531
        %v858 = vmul.bf16 %v855, %v534
        %v859 = vmul.bf16 %v856, %v533
        %863 = vrot.lane.b32.xlu0 %v857, 113
        %v864 = vpop.permute.xlu0 %863
        %865 = vrot.lane.b32.xlu0 %v858, 113
        %v866 = vpop.permute.xlu0 %865
        %867 = vrot.lane.b32.xlu0 %v859, 113
        %v868 = vpop.permute.xlu0 %867
        %v869 = vsel %vm399, %v864, %v866
        %v870 = vsel %vm399, %v866, %v868
        %873 = vst [vmem:[#allocation4 + $0x60] sm:$0xff] %v869
        %874 = vst [vmem:[#allocation4 + $0x68] sm:$0xff] %v870
        %v875 = vld [vmem:[#allocation3 + $0x8] sm:$0xff]
        %v876 = vld [vmem:[#allocation3 + $0x10] sm:$0xff]
        %v877 = vld [vmem:[#allocation3 + $0x18] sm:$0xff]
        %v878 = vmul.bf16 %v875, %v570
        %v879 = vmul.bf16 %v876, %v573
        %v880 = vmul.bf16 %v877, %v572
        %884 = vrot.lane.b32.xlu0 %v878, 112
        %v885 = vpop.permute.xlu0 %884
        %886 = vrot.lane.b32.xlu0 %v879, 112
        %v887 = vpop.permute.xlu0 %886
        %888 = vrot.lane.b32.xlu0 %v880, 112
        %v889 = vpop.permute.xlu0 %888
        %v890 = vsel %vm358, %v885, %v887
        %v891 = vsel %vm358, %v887, %v889
        %894 = vst [vmem:[#allocation4 + $0x70] sm:$0xff] %v890
        %895 = vst [vmem:[#allocation4 + $0x78] sm:$0xff] %v891
        %v896 = vld [vmem:[#allocation3 + $0x8] sm:$0xff]
        %v897 = vld [vmem:[#allocation3 + $0x10] sm:$0xff]
        %v898 = vld [vmem:[#allocation3 + $0x18] sm:$0xff]
        %v899 = vmul.bf16 %v896, %v620
        %v900 = vmul.bf16 %v897, %v623
        %v901 = vmul.bf16 %v898, %v622
        %905 = vrot.lane.b32.xlu0 %v899, 111
        %v906 = vpop.permute.xlu0 %905
        %907 = vrot.lane.b32.xlu0 %v900, 111
        %v908 = vpop.permute.xlu0 %907
        %909 = vrot.lane.b32.xlu0 %v901, 111
        %v910 = vpop.permute.xlu0 %909
        %v911 = vsel %vm311, %v906, %v908
        %v912 = vsel %vm311, %v908, %v910
        %915 = vst [vmem:[#allocation4 + $0x80] sm:$0xff] %v911
        %916 = vst [vmem:[#allocation4 + $0x88] sm:$0xff] %v912
        %v917 = vld [vmem:[%s2] sm:$0xff]
        %v918 = vld [vmem:[%s2 + $0x8] sm:$0xff]
        %v919 = vld [vmem:[#allocation4] sm:$0xff]
        %v920 = vld [vmem:[#allocation4 + $0x8] sm:$0xff]
        %v921 = vld [vmem:[#allocation4 + $0x10] sm:$0xff]
        %v922 = vld [vmem:[#allocation4 + $0x18] sm:$0xff]
        %v923 = vld [vmem:[#allocation4 + $0x20] sm:$0xff]
        %v924 = vld [vmem:[#allocation4 + $0x28] sm:$0xff]
        %v925 = vld [vmem:[#allocation4 + $0x30] sm:$0xff]
        %v926 = vld [vmem:[#allocation4 + $0x38] sm:$0xff]
        %v927 = vld [vmem:[#allocation4 + $0x40] sm:$0xff]
        %v928 = vld [vmem:[#allocation4 + $0x48] sm:$0xff]
        %v929 = vld [vmem:[#allocation4 + $0x50] sm:$0xff]
        %v930 = vld [vmem:[#allocation4 + $0x58] sm:$0xff]
        %v931 = vld [vmem:[#allocation4 + $0x60] sm:$0xff]
        %v932 = vld [vmem:[#allocation4 + $0x68] sm:$0xff]
        %v933 = vld [vmem:[#allocation4 + $0x70] sm:$0xff]
        %v934 = vld [vmem:[#allocation4 + $0x78] sm:$0xff]
        %v935 = vld [vmem:[#allocation4 + $0x80] sm:$0xff]
        %v936 = vld [vmem:[#allocation4 + $0x88] sm:$0xff]
        %v937 = vld [vmem:[%s4] sm:$0xff]
        %v938 = vld [vmem:[%s4 + $0x8] sm:$0xff]
        %940 = vset.pattern.permute.xlu0 0
        %941 = vperm.xlu0 %940, %v937
        %v942 = vpop.permute.xlu0 %941
        %945 = vset.pattern.permute.xlu0 0
        %946 = vperm.xlu0 %945, %v938
        %v947 = vpop.permute.xlu0 %946
        %v951 = vunpack.c.l.b16 %v917
        %v952 = vunpack.c.h.b16 %v917
        %v953 = vunpack.c.l.b16 %v918
        %v954 = vunpack.c.h.b16 %v918
        %v955 = vpack.c.b16 %v953, %v951
        %v956 = vpack.c.b16 %v954, %v952
        %v959 = vsel %vm686, %v956, 0
        %961 = vmatprep.subr.bf16.mxu0 %v920
        %962 = vmatpush1.bf16.msra.mxu0 %v919
        %963 = vmatprep.subr.bf16.mxu0 %v922
        %964 = vmatpush1.bf16.msra.mxu0 %v921
        %965 = vmatprep.subr.bf16.mxu0 %v924
        %966 = vmatpush1.bf16.msra.mxu0 %v923
        %967 = vmatprep.subr.bf16.mxu0 %v926
        %968 = vmatpush1.bf16.msra.mxu0 %v925
        %969 = vmatprep.subr.bf16.mxu0 %v928
        %970 = vmatpush1.bf16.msra.mxu0 %v927
        %971 = vmatprep.subr.bf16.mxu0 %v930
        %972 = vmatpush1.bf16.msra.mxu0 %v929
        %973 = vmatprep.subr.bf16.mxu0 %v932
        %974 = vmatpush1.bf16.msra.mxu0 %v931
        %975 = vmatprep.subr.bf16.mxu0 %v934
        %976 = vmatpush1.bf16.msra.mxu0 %v933
        %977 = vmatprep.subr.bf16.mxu0 %v936
        %978 = vmatpush1.bf16.msra.mxu0 %v935
        %979 = vmatprep.subr.bf16.mxu0 0
        %980 = vmatpush1.bf16.msra.mxu0 0
        %981 = vmatprep.subr.bf16.mxu0 0
        %982 = vmatpush1.bf16.msra.mxu0 0
        %983 = vmatprep.subr.bf16.mxu0 0
        %984 = vmatpush1.bf16.msra.mxu0 0
        %985 = vmatprep.subr.bf16.mxu0 0
        %986 = vmatpush1.bf16.msra.mxu0 0
        %987 = vmatprep.subr.bf16.mxu0 0
        %988 = vmatpush1.bf16.msra.mxu0 0
        %989 = vmatprep.subr.bf16.mxu0 0
        %990 = vmatpush1.bf16.msra.mxu0 0
        %991 = vmatprep.subr.bf16.mxu0 0
        %992 = vmatpush1.bf16.msra.mxu0 0
        %993 = vmatprep.mubr.bf16.mxu0 %v959
        %994 = vmatmul.mubr.bf16.gmra.mrb[0].mxu0 %v955
        %v995 = vpop.f32.mrb[0].mxu0
        %v996 = vadd.f32 %v942, %v995
        %v997 = vpop.f32.mrb[0].mxu0
        %v998 = vadd.f32 %v942, %v997
        %v999 = vpop.f32.mrb[0].mxu0
        %v1000 = vadd.f32 %v947, %v999
        %v1001 = vpop.f32.mrb[0].mxu0
        %v1002 = vadd.f32 %v947, %v1001
        %1003 = vdwg.mxu0
        %v1004 = vld [vmem:[%s241] sm:$0xff]
        %v1005 = vld [vmem:[%s241 + $0x8] sm:$0xff]
        %v1006 = vld [vmem:[%s241 + $0x10] sm:$0xff]
        %v1007 = vld [vmem:[%s241 + $0x18] sm:$0xff]
        %v1008 = vadd.f32 %v996, %v1004
        %v1009 = vadd.f32 %v998, %v1005
        %v1010 = vadd.f32 %v1000, %v1006
        %v1011 = vadd.f32 %v1002, %v1007
        %v1012 = vmax.f32 %v1008, 0.0
        %v1013 = vmax.f32 %v1009, 0.0
        %v1014 = vmax.f32 %v1010, 0.0
        %v1015 = vmax.f32 %v1011, 0.0
        %v1016 = vpack.c.bf16 %v1014, %v1012
        %v1017 = vpack.c.bf16 %v1015, %v1013
        %v1020 = vunpack.c.l.b16 %v1016
        %v1021 = vunpack.c.l.b16 %v1017
        %v1022 = vunpack.c.h.b16 %v1016
        %v1023 = vunpack.c.h.b16 %v1017
        %v1024 = vpack.c.b16 %v1021, %v1020
        %v1025 = vpack.c.b16 %v1023, %v1022
        %1028 = vst [vmem:[%s269] sm:$0xff] %v1024
        %1029 = vst [vmem:[%s269 + $0x8] sm:$0xff] %v1025
        %s1030 = sand.u32 %s162, 1
        %s1031 = scalar_lea.sflag [#allocation7], %s1030
        %s1032 = sand.u32 %s162, 1
        %s1033 = smul.addr %s1032, 16
        %s1034 = scalar_lea.vmem [#allocation8], %s1033
        // Predicated region
        $region49: #{tpu_custom_call.1} parent=43 // pred_check
          %p1035 = pneg %p172
        $region50: #{tpu_custom_call.1} parent=43 // pred_check_branch
          %1037 = sbr.rel (%p1035) target = $region52
        $region51: #{tpu_custom_call.1} parent=43 // pred_region
          %s1039 = ssub.s32 256, 256
          %1040 = vsyncadd %s1031, %s1039
          %s1041 = smul.addr %s23, 4
          %s1042 = smul.addr %s1041, 64
          %s1043 = scalar_lea.hbm %s6, %s1042
          %s1044 = sshll.u32 %s1034, 4
          %s1045 = int_to_ptr.vmem [resolvable:$true] %s1044
          %1050 = dma.vmem_to_hbm [thread:$0]  %s1045, 256, %s1043, %s1031, 128, 128, 8
        $region52: #{tpu_custom_call.1} parent=43 // pred_fallthru
          _
      $region44: #{tpu_custom_call.1} parent=5 // pred_fallthru
        _
      %p1051 = scmp.le.s32.totalorder 2, %s18
      // Predicated region
      $region53: #{tpu_custom_call.1} parent=5 // pred_check
        %p1052 = pneg %p1051
      $region54: #{tpu_custom_call.1} parent=5 // pred_check_branch
        %1054 = sbr.rel (%p1052) target = $region56
      $region55: #{tpu_custom_call.1} parent=5 // pred_region
        %s1055 = ssub.s32 %s18, 2
        // Predicated region
        $region57: #{tpu_custom_call.1} parent=55 // pred_check
          %p1056 = pneg %p178
        $region58: #{tpu_custom_call.1} parent=55 // pred_check_branch
          %1058 = sbr.rel (%p1056) target = $region60
        $region59: #{tpu_custom_call.1} parent=55 // pred_region
          %s1059 = sand.u32 %s163, 1
          %s1060 = scalar_lea.sflag [#allocation7], %s1059
          %s1061 = sand.u32 %s163, 1
          %s1062 = smul.addr %s1061, 16
          %s1063 = scalar_lea.vmem [#allocation8], %s1062
          %1064 = dma.done %s1060, 256
        $region60: #{tpu_custom_call.1} parent=55 // pred_fallthru
          _
      $region56: #{tpu_custom_call.1} parent=5 // pred_fallthru
        _
    $region6: #{tpu_custom_call.1} parent=1 // loop_footer
      %s22 = sadd.s32 1, %s18
    $region7: #{tpu_custom_call.1} parent=1 // loop_footer_branch
      %17 = sbr.rel target = $region3
    $region8: #{tpu_custom_call.1} parent=1 // loop_exit
      _
    %1065 = vsyncpa [#allocation6], 1
    %s1066 = scalar_lea.sflag [#allocation6], 1
    %1067 = vsyncpa %s1066, 1
    %1068 = vsyncpa [#allocation7], 1
    %s1069 = scalar_lea.sflag [#allocation7], 1
    %1070 = vsyncpa %s1069, 1

</llo_original>
